<compile_context>
chip_gen: v6e
topology: v6e:2x2x1
jax: 0.10.0
libtpu: 0.0.40
codegen_flags: <defaults>
</compile_context>

<pallas_src>
import jax
import jax.numpy as jnp
from jax import lax
from jax.experimental import pallas as pl
from jax.experimental.pallas import tpu as pltpu


_LANE = 128


def _round_up(n, m):
    return ((n + m - 1) // m) * m


# --------------------------------------------------------------------------
# Small path: whole problem in one VMEM block (linear-probe sized inputs).
# --------------------------------------------------------------------------
def _linear_small_kernel(x_ref, w_ref, b_ref, o_ref):
    # x: (B, D), w: (Lp, D), b: (1, Lp) -> o: (B, Lp)
    # dot_general with contracting dims (1, 1): feeds W in its native (L, D)
    # layout straight into the MXU (no .T / XLU transpose of the weight tile).
    acc = lax.dot_general(
        x_ref[...], w_ref[...],
        dimension_numbers=(((1,), (1,)), ((), ())),
        preferred_element_type=jnp.float32,
    )
    o_ref[...] = (acc + b_ref[...]).astype(o_ref.dtype)


def _linear_small(x2d, w_pad, b_pad, out_dtype):
    B, D = x2d.shape
    Lp = w_pad.shape[0]
    return pl.pallas_call(
        _linear_small_kernel,
        out_shape=jax.ShapeDtypeStruct((B, Lp), out_dtype),
        grid=(1,),
        in_specs=[
            pl.BlockSpec((B, D), lambda i: (0, 0)),
            pl.BlockSpec((Lp, D), lambda i: (0, 0)),
            pl.BlockSpec((1, Lp), lambda i: (0, 0)),
        ],
        out_specs=pl.BlockSpec((B, Lp), lambda i: (0, 0)),
        compiler_params=pltpu.CompilerParams(
            dimension_semantics=("arbitrary",)),
    )(x2d, w_pad, b_pad)


# --------------------------------------------------------------------------
# Tiled path: K-last grid with a resident f32 accumulator (real probe sizes).
# --------------------------------------------------------------------------
def _linear_tiled_kernel(x_ref, w_ref, b_ref, o_ref, acc_ref):
    k = pl.program_id(2)

    @pl.when(k == 0)
    def _():
        acc_ref[...] = jnp.zeros_like(acc_ref)

    acc_ref[...] += lax.dot_general(
        x_ref[...], w_ref[...],
        dimension_numbers=(((1,), (1,)), ((), ())),
        preferred_element_type=jnp.float32,
    )

    @pl.when(k == pl.num_programs(2) - 1)
    def _():
        # Bias added once per output tile, then cast + lane-dense store.
        o_ref[...] = (acc_ref[...] + b_ref[...]).astype(o_ref.dtype)


def _linear_tiled(x_pad, w_pad, b_pad, out_dtype, tm, tn, tk):
    Bp, Dp = x_pad.shape
    Lp = w_pad.shape[0]
    grid = (Bp // tm, Lp // tn, Dp // tk)
    return pl.pallas_call(
        _linear_tiled_kernel,
        out_shape=jax.ShapeDtypeStruct((Bp, Lp), out_dtype),
        grid_spec=pltpu.PrefetchScalarGridSpec(
            num_scalar_prefetch=0,
            grid=grid,
            in_specs=[
                pl.BlockSpec((tm, tk), lambda i, j, k: (i, k)),   # x tile
                pl.BlockSpec((tn, tk), lambda i, j, k: (j, k)),   # W tile (L, D)
                pl.BlockSpec((1, tn), lambda i, j, k: (0, j)),    # bias tile
            ],
            out_specs=pl.BlockSpec((tm, tn), lambda i, j, k: (i, j)),
            scratch_shapes=[pltpu.VMEM((tm, tn), jnp.float32)],
        ),
        compiler_params=pltpu.CompilerParams(
            dimension_semantics=("parallel", "parallel", "arbitrary")),
    )(x_pad, w_pad, b_pad)


# --------------------------------------------------------------------------
# Wrapper: flatten, pad for lane density / tile multiples, dispatch, slice.
# --------------------------------------------------------------------------
def linear_classifier_forward(x, weight, bias, *, tm=256, tn=256, tk=512):
    """LinearClassifier forward: flatten(x) @ W.T + b.

    x: (B, ...) any trailing dims; weight: (L, D); bias: (L,). Returns (B, L).
    Tile defaults (tm, tn, tk) are modest f32 tiles that fit comfortably in the
    default scoped VMEM on v5e (16 MiB), v6e (32 MiB) and v7x (32 MiB).
    """
    B = x.shape[0]
    x2d = x.reshape(B, -1)                       # glue: like x.view(B, -1)
    D = x2d.shape[1]
    L, Dw = weight.shape
    assert Dw == D, f"weight shape {weight.shape} incompatible with dim {D}"
    out_dtype = x2d.dtype

    itemsize = jnp.dtype(x2d.dtype).itemsize
    small = (B * D + L * D + B * L) * itemsize <= (2 << 20)   # ~2 MiB budget

    if small:
        # Pure fixed-overhead regime: keep one block, but make the output
        # lane-dense (pad L up to a multiple of 128; zero weight rows / bias
        # cost nothing on the MXU), then slice back to L.
        Lp = _round_up(L, _LANE)
        w_pad = jnp.pad(weight, ((0, Lp - L), (0, 0)))
        b_pad = jnp.pad(bias, (0, Lp - L)).reshape(1, Lp).astype(jnp.float32)
        out = _linear_small(x2d, w_pad, b_pad, out_dtype)
        return out[:, :L]

    # Tiled path: pad every dim up to its tile multiple (zero padding along the
    # contraction dim is exact), run the K-last accumulator grid, slice back.
    # TODO(synk): optionally cast x/W to bf16 (f32 accumulation) for 4-5x MXU
    # throughput on v6e/v7x when the probe tolerates it.
    Bp = _round_up(B, tm)
    Lp = _round_up(L, tn)
    Dp = _round_up(D, tk)
    x_pad = jnp.pad(x2d, ((0, Bp - B), (0, Dp - D)))
    w_pad = jnp.pad(weight, ((0, Lp - L), (0, Dp - D)))
    b_pad = jnp.pad(bias, (0, Lp - L)).reshape(1, Lp).astype(jnp.float32)
    out = _linear_tiled(x_pad, w_pad, b_pad, out_dtype, tm, tn, tk)
    return out[:B, :L]


if __name__ == "__main__":
    key = jax.random.PRNGKey(0)
    k_x, k_w, k_x2, k_w2 = jax.random.split(key, 4)

    # ---- Small shapes consistent with the module: (B, C, H, W) -> dim=C*H*W.
    B, C, H, W = 2, 4, 4, 2
    dim = C * H * W                 # 32
    num_labels = 10

    x = jax.random.normal(k_x, (B, C, H, W), dtype=jnp.float32)
    # Deterministic init matching LinearClassifier.__init__:
    #   weight ~ N(0, 0.01), bias = 0
    weight = 0.01 * jax.random.normal(k_w, (num_labels, dim), dtype=jnp.float32)
    bias = jnp.zeros((num_labels,), dtype=jnp.float32)

    out = linear_classifier_forward(x, weight, bias)
    out = jax.block_until_ready(out)

    ref = jnp.dot(x.reshape(B, -1), weight.T,
                  precision=lax.Precision.HIGHEST) + bias
    assert out.shape == (B, num_labels)
    assert jnp.allclose(out, ref, atol=1e-5, rtol=1e-5)

    # ---- Also exercise the tiled path at a modest probe-like size.
    B2, D2, L2 = 256, 1024, 384
    x2 = jax.random.normal(k_x2, (B2, D2), dtype=jnp.float32)
    w2 = 0.01 * jax.random.normal(k_w2, (L2, D2), dtype=jnp.float32)
    b2 = jnp.zeros((L2,), dtype=jnp.float32)

    out2 = jax.block_until_ready(linear_classifier_forward(x2, w2, b2))
    ref2 = jnp.dot(x2, w2.T, precision=lax.Precision.HIGHEST) + b2
    assert out2.shape == (B2, L2)
    assert jnp.allclose(out2, ref2, atol=1e-4, rtol=1e-4)

    print("KERNEL_OK")
</pallas_src>

<mosaic_0001>
module attributes {stable_mosaic.version = 11 : i64} {
  func.func @_linear_small_kernel(%arg0: i32, %arg1: memref<2x32xf32, #tpu.memory_space<vmem>>, %arg2: memref<128x32xf32, #tpu.memory_space<vmem>>, %arg3: memref<1x128xf32, #tpu.memory_space<vmem>>, %arg4: memref<2x128xf32, #tpu.memory_space<vmem>>) attributes {dimension_semantics = [#tpu.dimension_semantics<arbitrary>], iteration_bounds = array<i64: 1>, scalar_prefetch = 0 : i64, scratch_operands = 0 : i64, tpu.core_type = #tpu.core_type<tc>, window_params = [{pipeline_mode = #tpu.pipeline_mode<synchronous>, transform_indices = @transform_0, window_bounds = array<i64: 2, 32>}, {pipeline_mode = #tpu.pipeline_mode<synchronous>, transform_indices = @transform_1, window_bounds = array<i64: 128, 32>}, {pipeline_mode = #tpu.pipeline_mode<synchronous>, transform_indices = @transform_2, window_bounds = array<i64: 1, 128>}, {pipeline_mode = #tpu.pipeline_mode<synchronous>, transform_indices = @transform_3, window_bounds = array<i64: 2, 128>}]} {
    %c0 = arith.constant 0 : index
    %c0_0 = arith.constant 0 : index
    %0 = vector.load %arg1[%c0, %c0_0] : memref<2x32xf32, #tpu.memory_space<vmem>>, vector<2x32xf32>
    %c0_1 = arith.constant 0 : index
    %c0_2 = arith.constant 0 : index
    %1 = vector.load %arg2[%c0_1, %c0_2] : memref<128x32xf32, #tpu.memory_space<vmem>>, vector<128x32xf32>
    %cst = arith.constant dense<0.000000e+00> : vector<2x128xf32>
    %2 = tpu.matmul %0, %1, %cst {dimension_numbers = #tpu.dot_dimension_numbers<[1], [1], [0], [0], [0, 0, 1, 0], [], []>} : vector<2x32xf32>, vector<128x32xf32>, vector<2x128xf32> -> vector<2x128xf32>
    %c0_3 = arith.constant 0 : index
    %c0_4 = arith.constant 0 : index
    %3 = vector.load %arg3[%c0_3, %c0_4] : memref<1x128xf32, #tpu.memory_space<vmem>>, vector<1x128xf32>
    %4 = vector.broadcast %3 : vector<1x128xf32> to vector<2x128xf32>
    %5 = arith.addf %2, %4 : vector<2x128xf32>
    %c0_5 = arith.constant 0 : index
    %c0_6 = arith.constant 0 : index
    %6 = vector.load %arg4[%c0_5, %c0_6] : memref<2x128xf32, #tpu.memory_space<vmem>>, vector<2x128xf32>
    tpu.vector_store %arg4[%c0_5, %c0_6], %5 {strides = array<i32>} : memref<2x128xf32, #tpu.memory_space<vmem>>, vector<2x128xf32>,
    return
  }
  func.func @transform_0(%arg0: i32) -> (i32, i32) {
    %c0_i32 = arith.constant 0 : i32
    %c0_i32_0 = arith.constant 0 : i32
    %c0_i32_1 = arith.constant 0 : i32
    return %c0_i32, %c0_i32_0 : i32, i32
  }
  func.func @transform_1(%arg0: i32) -> (i32, i32) {
    %c0_i32 = arith.constant 0 : i32
    %c0_i32_0 = arith.constant 0 : i32
    %c0_i32_1 = arith.constant 0 : i32
    return %c0_i32, %c0_i32_0 : i32, i32
  }
  func.func @transform_2(%arg0: i32) -> (i32, i32) {
    %c0_i32 = arith.constant 0 : i32
    %c0_i32_0 = arith.constant 0 : i32
    %c0_i32_1 = arith.constant 0 : i32
    return %c0_i32, %c0_i32_0 : i32, i32
  }
  func.func @transform_3(%arg0: i32) -> (i32, i32) {
    %c0_i32 = arith.constant 0 : i32
    %c0_i32_0 = arith.constant 0 : i32
    %c0_i32_1 = arith.constant 0 : i32
    return %c0_i32, %c0_i32_0 : i32, i32
  }
}

</mosaic_0001>

<llo_original>
// kernel: tpu_custom_call.1
$region0: #{tpu_custom_call.1}
  #allocation0 [shape = 'u32[]', space=smem, size = 0x4, offset = 0x4, fixed_abs, tag = 'smem constant byte address 0x4 - core index']
  #allocation1 [shape = 'u32[144,128]{1,0:T(1,128)}', space=vmem, size = 0x12000, scoped, tag = 'internal scratch']
  %s0 = inlined_call_operand.vmem [shape: f32[2,32], index: 0, kind: input, shape index: {}]
  %s1 = inlined_call_operand.vmem [shape: f32[128,32], index: 1, kind: input, shape index: {}]
  %s2 = inlined_call_operand.vmem [shape: f32[1,128], index: 2, kind: input, shape index: {}]
  %s3 = inlined_call_operand.hbm [shape: f32[2,128], index: 3, kind: output, shape index: {}]
  %s4 = sld [smem:[#allocation0]]
  $region22: #{tpu_custom_call.1} parent=0
    _
  %s6 = ssub.s32 1, %s4
  %s7 = scalar_select 0, %s6, %s4
  $region1: #{tpu_custom_call.1} parent=0
    #allocation2 [shape = 'u8[1024]{0}', space=vmem, size = 0x400, scoped, tag = 'output window, operand 0, single buffered']
    #allocation3 [shape = 's32[1]{0}', space=sflag, size = 0x4, scoped, tag = 'scoped memory for tpu_custom_call.1']
    %8 = vsyncpa [#allocation3], 0
    // Predicated region
    $region2: #{tpu_custom_call.1} parent=1 // pred_check
      _
    $region3: #{tpu_custom_call.1} parent=1 // pred_check_branch
      %10 = sbr.rel (0) target = $region5
    $region4: #{tpu_custom_call.1} parent=1 // pred_region
      _
    $region5: #{tpu_custom_call.1} parent=1 // pred_fallthru
      _
    // Predicated region
    $region6: #{tpu_custom_call.1} parent=1 // pred_check
      _
    $region7: #{tpu_custom_call.1} parent=1 // pred_check_branch
      %12 = sbr.rel (0) target = $region9
    $region8: #{tpu_custom_call.1} parent=1 // pred_region
      _
    $region9: #{tpu_custom_call.1} parent=1 // pred_fallthru
      _
    // Predicated region
    $region10: #{tpu_custom_call.1} parent=1 // pred_check
      _
    $region11: #{tpu_custom_call.1} parent=1 // pred_check_branch
      %14 = sbr.rel (0) target = $region13
    $region12: #{tpu_custom_call.1} parent=1 // pred_region
      _
    $region13: #{tpu_custom_call.1} parent=1 // pred_fallthru
      _
    %v15 = vld [vmem:[%s0] sm:$0x3]
    %v16 = vld [vmem:[%s1] sm:$0xff]
    %v17 = vld [vmem:[%s1 + $0x8] sm:$0xff]
    %v18 = vld [vmem:[%s1 + $0x10] sm:$0xff]
    %v19 = vld [vmem:[%s1 + $0x18] sm:$0xff]
    %v20 = vld [vmem:[%s1 + $0x20] sm:$0xff]
    %v21 = vld [vmem:[%s1 + $0x28] sm:$0xff]
    %v22 = vld [vmem:[%s1 + $0x30] sm:$0xff]
    %v23 = vld [vmem:[%s1 + $0x38] sm:$0xff]
    %v24 = vld [vmem:[%s1 + $0x40] sm:$0xff]
    %v25 = vld [vmem:[%s1 + $0x48] sm:$0xff]
    %v26 = vld [vmem:[%s1 + $0x50] sm:$0xff]
    %v27 = vld [vmem:[%s1 + $0x58] sm:$0xff]
    %v28 = vld [vmem:[%s1 + $0x60] sm:$0xff]
    %v29 = vld [vmem:[%s1 + $0x68] sm:$0xff]
    %v30 = vld [vmem:[%s1 + $0x70] sm:$0xff]
    %v31 = vld [vmem:[%s1 + $0x78] sm:$0xff]
    %v32 = vld [vmem:[%s2] sm:$0x1]
    %v34 = vlaneseq
    %v35 = vshrl.u32 %v34, 7
    %v36 = vsub.s32 0, %v35
    %v37 = vrot.slane %v32, %v36
    %vm39 = vcmask 261120
    %v41 = vsel %vm39, %v15, 0
    %v44 = vsel %vm39, %v16, 0
    %v47 = vsel %vm39, %v17, 0
    %v50 = vsel %vm39, %v18, 0
    %v53 = vsel %vm39, %v19, 0
    %v56 = vsel %vm39, %v20, 0
    %v59 = vsel %vm39, %v21, 0
    %v62 = vsel %vm39, %v22, 0
    %v65 = vsel %vm39, %v23, 0
    %v68 = vsel %vm39, %v24, 0
    %v71 = vsel %vm39, %v25, 0
    %v74 = vsel %vm39, %v26, 0
    %v77 = vsel %vm39, %v27, 0
    %v80 = vsel %vm39, %v28, 0
    %v83 = vsel %vm39, %v29, 0
    %v86 = vsel %vm39, %v30, 0
    %v89 = vsel %vm39, %v31, 0
    %91 = vmatprep.subr.mxu0 0.0
    %92 = vmatpush1.xpose.msra.mxu0 %v89
    %93 = vmatprep.subr.mxu0 0.0
    %94 = vmatpush1.xpose.msra.mxu0 %v86
    %95 = vmatprep.subr.mxu0 0.0
    %96 = vmatpush1.xpose.msra.mxu0 %v83
    %97 = vmatprep.subr.mxu0 0.0
    %98 = vmatpush1.xpose.msra.mxu0 %v80
    %99 = vmatprep.subr.mxu0 0.0
    %100 = vmatpush1.xpose.msra.mxu0 %v77
    %101 = vmatprep.subr.mxu0 0.0
    %102 = vmatpush1.xpose.msra.mxu0 %v74
    %103 = vmatprep.subr.mxu0 0.0
    %104 = vmatpush1.xpose.msra.mxu0 %v71
    %105 = vmatprep.subr.mxu0 0.0
    %106 = vmatpush1.xpose.msra.mxu0 %v68
    %107 = vmatprep.subr.mxu0 0.0
    %108 = vmatpush1.xpose.msra.mxu0 %v65
    %109 = vmatprep.subr.mxu0 0.0
    %110 = vmatpush1.xpose.msra.mxu0 %v62
    %111 = vmatprep.subr.mxu0 0.0
    %112 = vmatpush1.xpose.msra.mxu0 %v59
    %113 = vmatprep.subr.mxu0 0.0
    %114 = vmatpush1.xpose.msra.mxu0 %v56
    %115 = vmatprep.subr.mxu0 0.0
    %116 = vmatpush1.xpose.msra.mxu0 %v53
    %117 = vmatprep.subr.mxu0 0.0
    %118 = vmatpush1.xpose.msra.mxu0 %v50
    %119 = vmatprep.subr.mxu0 0.0
    %120 = vmatpush1.xpose.msra.mxu0 %v47
    %121 = vmatprep.subr.mxu0 0.0
    %122 = vmatpush1.xpose.msra.mxu0 %v44
    %123 = vmatprep.subr.mxu0 0.0
    %124 = vmatpush2.xpose.msra.mxu0 0.0
    %125 = vmatprep.subr.mxu0 0.0
    %126 = vmatpush2.xpose.msra.mxu0 0.0
    %127 = vmatprep.subr.mxu0 0.0
    %128 = vmatpush2.xpose.msra.mxu0 0.0
    %129 = vmatprep.subr.mxu0 0.0
    %130 = vmatpush2.xpose.msra.mxu0 0.0
    %131 = vmatprep.subr.mxu0 0.0
    %132 = vmatpush2.xpose.msra.mxu0 0.0
    %133 = vmatprep.subr.mxu0 0.0
    %134 = vmatpush2.xpose.msra.mxu0 0.0
    %135 = vmatprep.subr.mxu0 0.0
    %136 = vmatpush2.xpose.msra.mxu0 0.0
    %137 = vmatprep.subr.mxu0 0.0
    %138 = vmatpush2.xpose.msra.mxu0 0.0
    %139 = vmatprep.subr.mxu0 0.0
    %140 = vmatpush2.xpose.msra.mxu0 0.0
    %141 = vmatprep.subr.mxu0 0.0
    %142 = vmatpush2.xpose.msra.mxu0 0.0
    %143 = vmatprep.subr.mxu0 0.0
    %144 = vmatpush2.xpose.msra.mxu0 0.0
    %145 = vmatprep.subr.mxu0 0.0
    %146 = vmatpush2.xpose.msra.mxu0 0.0
    %147 = vmatprep.subr.mxu0 0.0
    %148 = vmatpush2.xpose.msra.mxu0 0.0
    %149 = vmatprep.subr.mxu0 0.0
    %150 = vmatpush2.xpose.msra.mxu0 0.0
    %151 = vmatprep.subr.mxu0 0.0
    %152 = vmatpush2.xpose.msra.mxu0 0.0
    %153 = vmatprep.subr.mxu0 0.0
    %154 = vmatpush2.xpose.msra.mxu0 0.0
    %155 = vmatprep.mubr.f32.mxu0 0.0
    %156 = vmatmul.mubr.f32.gmra.mxu0 %v41
    %v157 = vpop.f32.mrf.mxu0
    %v158 = vadd.f32 %v37, %v157
    %v159 = vpop.f32.mrf.mxu0
    %160 = vdwg.mxu0
    %161 = vst [vmem:[#allocation2] sm:$0x3] %v158
    // Predicated region
    $region14: #{tpu_custom_call.1} parent=1 // pred_check
      _
    $region15: #{tpu_custom_call.1} parent=1 // pred_check_branch
      %163 = sbr.rel (0) target = $region17
    $region16: #{tpu_custom_call.1} parent=1 // pred_region
      %s165 = ssub.s32 32, 32
      %166 = vsyncadd [#allocation3], %s165
      %s168 = sshll.u32 [#allocation2], 4
      %s169 = int_to_ptr.vmem [resolvable:$true] %s168
      %171 = dma.vmem_to_hbm [thread:$0]  %s169, 32, %s3, [#allocation3]
    $region17: #{tpu_custom_call.1} parent=1 // pred_fallthru
      _
    // Predicated region
    $region18: #{tpu_custom_call.1} parent=1 // pred_check
      _
    $region19: #{tpu_custom_call.1} parent=1 // pred_check_branch
      %173 = sbr.rel (0) target = $region21
    $region20: #{tpu_custom_call.1} parent=1 // pred_region
      %174 = dma.done [#allocation3], 32
    $region21: #{tpu_custom_call.1} parent=1 // pred_fallthru
      _
    %175 = vsyncpa [#allocation3], 1

</llo_original>
